<compile_context>
chip_gen: v5e
topology: v5e:2x2
jax: 0.10.0
libtpu: 0.0.40
codegen_flags: <defaults>
</compile_context>

<pallas_src>
import jax
import jax.numpy as jnp
from jax.experimental import pallas as pl
from jax.experimental.pallas import tpu as pltpu

C_IN = 3
C_OUT = 64
KSIZE = 7
STRIDE = 7
K_DIM = C_IN * KSIZE * KSIZE  # 147

# Lane-tile cap for the M (= Ho*Wo) axis.  At TM=8192 / f32 the per-step VMEM
# footprint is ~13 MiB (p tile 4.6 MiB x2 bufs + out tile 2 MiB x2 + resident
# weights), safe on every generation once the scoped-VMEM limit is raised.
TM_MAX = 8192
VMEM_LIMIT_BYTES = 28 << 20
# v7x has 2 TensorCores sharing the "parallel" grid axes; keep a few
# independent grid steps even at batch 1 so neither core idles.
MIN_PARALLEL_STEPS = 4


def _cdiv(a, b):
    return (a + b - 1) // b


def _round_up(x, m):
    return ((x + m - 1) // m) * m


def _conv_matmul_kernel(p_ref, w_ref, b_ref, o_ref):
    # p_ref: (1, K, TM)  patches^T (K=147 on sublanes, TM on lanes)
    # w_ref: (64, K)     weights   (constant block index -> stays resident)
    # b_ref: (64, 1)     bias      (broadcast along lanes)
    # o_ref: (1, 64, TM) output    (lane-dense last dim, unmasked stores)
    acc = jnp.dot(w_ref[...], p_ref[0], preferred_element_type=jnp.float32)
    o_ref[0] = (acc + b_ref[...]).astype(o_ref.dtype)


def _choose_m_tiling(m_img, batch):
    """Balanced, 128-aligned M tiling.

    Minimal block count for TM_MAX, tiles rounded up to a lane multiple, then
    (for v7x's two TensorCores) split further so batch * n_mblocks reaches
    MIN_PARALLEL_STEPS -- but never so far that a block would be pure padding.
    """
    n_mblocks = max(1, _cdiv(m_img, TM_MAX))
    max_useful = max(1, _cdiv(m_img, 128))
    while batch * n_mblocks < MIN_PARALLEL_STEPS and n_mblocks < max_useful:
        n_mblocks += 1
    tm = _round_up(_cdiv(m_img, n_mblocks), 128)
    n_mblocks = _cdiv(m_img, tm)          # drop fully-padded trailing blocks
    m_pad = n_mblocks * tm
    return tm, n_mblocks, m_pad


def conv2d_patch_pallas(x_nchw, weight, bias, *, use_bf16=False):
    """Conv2d(3, 64, kernel_size=7, stride=7) via a tiled Pallas matmul.

    x_nchw : (N, 3, H, W) float32, H and W divisible by 7
    weight : (64, 3, 7, 7) float32  (PyTorch OIHW layout)
    bias   : (64,) float32
    returns: (N, 64, H//7, W//7) float32   (NCHW, matching PyTorch)

    use_bf16=True streams the patchify intermediate in bf16 (cast *before*
    the transpose, so both its HBM write and the kernel's read move half the
    bytes); the MXU still accumulates in f32.  Keep False for exact f32
    parity with the PyTorch module.
    """
    n, c, h, w = x_nchw.shape
    assert c == C_IN and h % KSIZE == 0 and w % KSIZE == 0
    ho, wo = h // KSIZE, w // KSIZE
    m_img = ho * wo

    x_src = x_nchw.astype(jnp.bfloat16) if use_bf16 else x_nchw
    w_mat = weight.reshape(C_OUT, K_DIM)
    if use_bf16:
        w_mat = w_mat.astype(jnp.bfloat16)
    b_mat = bias.reshape(C_OUT, 1).astype(jnp.float32)

    # --- glue: patchify straight into the transposed (K, M) layout, per image.
    # (N, C, Ho, kh, Wo, kw) -> (N, C, kh, kw, Ho, Wo) -> (N, K=147, Ho*Wo)
    # TODO(synk): fuse this transpose into the kernel (see header comment).
    p = x_src.reshape(n, C_IN, ho, KSIZE, wo, KSIZE)
    p = jnp.transpose(p, (0, 1, 3, 5, 2, 4))
    p = p.reshape(n, K_DIM, m_img)

    tm, n_mblocks, m_pad = _choose_m_tiling(m_img, n)
    if m_pad != m_img:
        # Balanced tiling keeps this pad < 128 * n_mblocks columns; it pads
        # only the trailing lane edge of the transpose output, so XLA can fuse
        # it into the same producer pass (no standalone full-p copy expected).
        p = jnp.pad(p, ((0, 0), (0, 0), (0, m_pad - m_img)))

    cost = pl.CostEstimate(
        flops=int(2 * n * m_img * K_DIM * C_OUT),
        transcendentals=0,
        bytes_accessed=int(p.size * p.dtype.itemsize
                           + w_mat.size * w_mat.dtype.itemsize
                           + b_mat.size * 4
                           + n * C_OUT * m_pad * 4),
    )

    out = pl.pallas_call(
        _conv_matmul_kernel,
        out_shape=jax.ShapeDtypeStruct((n, C_OUT, m_pad), jnp.float32),
        grid=(n, n_mblocks),
        in_specs=[
            pl.BlockSpec((1, K_DIM, tm), lambda b, mb: (b, 0, mb)),
            pl.BlockSpec((C_OUT, K_DIM), lambda b, mb: (0, 0)),
            pl.BlockSpec((C_OUT, 1), lambda b, mb: (0, 0)),
        ],
        out_specs=pl.BlockSpec((1, C_OUT, tm), lambda b, mb: (b, 0, mb)),
        compiler_params=pltpu.CompilerParams(
            dimension_semantics=("parallel", "parallel"),
            vmem_limit_bytes=VMEM_LIMIT_BYTES),
        cost_estimate=cost,
    )(p, w_mat, b_mat)

    # (N, 64, M_pad) -> drop padded columns -> (N, 64, Ho, Wo).
    # Pure slice + reshape: no XLA transpose pass on the output.
    return out[:, :, :m_img].reshape(n, C_OUT, ho, wo)


def init_params(key):
    """Deterministic init mirroring Net._initialize_weights().

    weight ~ U[0, 1)  (init.uniform_ default)
    bias   ~ U[-1/sqrt(fan_in), 1/sqrt(fan_in)]  (PyTorch Conv2d default)
    """
    kw, kb = jax.random.split(key)
    weight = jax.random.uniform(kw, (C_OUT, C_IN, KSIZE, KSIZE),
                                dtype=jnp.float32)
    fan_in = C_IN * KSIZE * KSIZE
    bound = 1.0 / jnp.sqrt(jnp.float32(fan_in))
    bias = jax.random.uniform(kb, (C_OUT,), dtype=jnp.float32,
                              minval=-bound, maxval=bound)
    return weight, bias


if __name__ == "__main__":
    key = jax.random.PRNGKey(0)
    k_x1, k_x2, k_p = jax.random.split(key, 3)
    weight, bias = init_params(k_p)

    def ref_conv(x):
        y = jax.lax.conv_general_dilated(
            x, weight, window_strides=(STRIDE, STRIDE), padding="VALID",
            dimension_numbers=("NCHW", "OIHW", "NCHW"))
        return y + bias.reshape(1, C_OUT, 1, 1)

    # Case 1: batch=2, 28x28 -> (2, 64, 4, 4); f32 parity with PyTorch Conv2d.
    x1 = jax.random.normal(k_x1, (2, 3, 28, 28), dtype=jnp.float32)
    y1 = jax.block_until_ready(conv2d_patch_pallas(x1, weight, bias))
    assert y1.shape == (2, C_OUT, 4, 4), y1.shape
    assert jnp.allclose(y1, ref_conv(x1), atol=1e-4, rtol=1e-4)

    # Case 2: batch=1, 112x112 -> exercises the multi-M-block grid path that
    # keeps >= MIN_PARALLEL_STEPS parallel steps for v7x's two TensorCores.
    x2 = jax.random.normal(k_x2, (1, 3, 112, 112), dtype=jnp.float32)
    y2 = jax.block_until_ready(conv2d_patch_pallas(x2, weight, bias))
    assert y2.shape == (1, C_OUT, 16, 16), y2.shape
    assert jnp.allclose(y2, ref_conv(x2), atol=1e-4, rtol=1e-4)

    # Case 3: bf16-streamed patchify (inference path); f32 MXU accumulate, so
    # only input-rounding error vs. the f32 path.
    y1b = jax.block_until_ready(
        conv2d_patch_pallas(x1, weight, bias, use_bf16=True))
    assert jnp.allclose(y1b, y1, atol=0.5, rtol=0.05)

    print("KERNEL_OK")
</pallas_src>

<mosaic_0001>
module attributes {stable_mosaic.version = 11 : i64} {
  func.func @_conv_matmul_kernel(%arg0: i32, %arg1: i32, %arg2: memref<1x147x128xf32, #tpu.memory_space<vmem>>, %arg3: memref<64x147xf32, #tpu.memory_space<vmem>>, %arg4: memref<64x1xf32, #tpu.memory_space<vmem>>, %arg5: memref<1x64x128xf32, #tpu.memory_space<vmem>>) attributes {dimension_semantics = [#tpu.dimension_semantics<parallel>, #tpu.dimension_semantics<parallel>], iteration_bounds = array<i64: 2, 1>, scalar_prefetch = 0 : i64, scratch_operands = 0 : i64, tpu.core_type = #tpu.core_type<tc>, window_params = [{transform_indices = @transform_0, window_bounds = array<i64: 1, 147, 128>}, {pipeline_mode = #tpu.pipeline_mode<synchronous>, transform_indices = @transform_1, window_bounds = array<i64: 64, 147>}, {pipeline_mode = #tpu.pipeline_mode<synchronous>, transform_indices = @transform_2, window_bounds = array<i64: 64, 1>}, {transform_indices = @transform_3, window_bounds = array<i64: 1, 64, 128>}]} {
    %c0 = arith.constant 0 : index
    %c0_0 = arith.constant 0 : index
    %0 = vector.load %arg3[%c0, %c0_0] : memref<64x147xf32, #tpu.memory_space<vmem>>, vector<64x147xf32>
    %c0_1 = arith.constant 0 : index
    %c0_2 = arith.constant 0 : index
    %c0_3 = arith.constant 0 : index
    %1 = vector.load %arg2[%c0_1, %c0_2, %c0_3] : memref<1x147x128xf32, #tpu.memory_space<vmem>>, vector<1x147x128xf32>
    %2 = vector.shape_cast %1 : vector<1x147x128xf32> to vector<147x128xf32>
    %cst = arith.constant dense<0.000000e+00> : vector<64x128xf32>
    %3 = tpu.matmul %0, %2, %cst {dimension_numbers = #tpu.dot_dimension_numbers<[1], [0], [0], [1], [0, 0, 1, 1], [], []>} : vector<64x147xf32>, vector<147x128xf32>, vector<64x128xf32> -> vector<64x128xf32>
    %c0_4 = arith.constant 0 : index
    %c0_5 = arith.constant 0 : index
    %4 = vector.load %arg4[%c0_4, %c0_5] : memref<64x1xf32, #tpu.memory_space<vmem>>, vector<64x1xf32>
    %5 = vector.broadcast %4 : vector<64x1xf32> to vector<64x128xf32>
    %6 = arith.addf %3, %5 : vector<64x128xf32>
    %c0_6 = arith.constant 0 : index
    %c0_7 = arith.constant 0 : index
    %c0_8 = arith.constant 0 : index
    %7 = vector.load %arg5[%c0_6, %c0_7, %c0_8] : memref<1x64x128xf32, #tpu.memory_space<vmem>>, vector<1x64x128xf32>
    %8 = vector.shape_cast %7 : vector<1x64x128xf32> to vector<64x128xf32>
    %9 = vector.shape_cast %6 : vector<64x128xf32> to vector<1x64x128xf32>
    tpu.vector_store %arg5[%c0_6, %c0_7, %c0_8], %9 {strides = array<i32>} : memref<1x64x128xf32, #tpu.memory_space<vmem>>, vector<1x64x128xf32>,
    return
  }
  func.func @transform_0(%arg0: i32, %arg1: i32) -> (i32, i32, i32) {
    %c0_i32 = arith.constant 0 : i32
    %c0_i32_0 = arith.constant 0 : i32
    return %arg0, %c0_i32, %arg1 : i32, i32, i32
  }
  func.func @transform_1(%arg0: i32, %arg1: i32) -> (i32, i32) {
    %c0_i32 = arith.constant 0 : i32
    %c0_i32_0 = arith.constant 0 : i32
    %c0_i32_1 = arith.constant 0 : i32
    return %c0_i32, %c0_i32_0 : i32, i32
  }
  func.func @transform_2(%arg0: i32, %arg1: i32) -> (i32, i32) {
    %c0_i32 = arith.constant 0 : i32
    %c0_i32_0 = arith.constant 0 : i32
    %c0_i32_1 = arith.constant 0 : i32
    return %c0_i32, %c0_i32_0 : i32, i32
  }
  func.func @transform_3(%arg0: i32, %arg1: i32) -> (i32, i32, i32) {
    %c0_i32 = arith.constant 0 : i32
    %c0_i32_0 = arith.constant 0 : i32
    return %arg0, %c0_i32, %arg1 : i32, i32, i32
  }
}

</mosaic_0001>

<llo_original>
// kernel: tpu_custom_call.1
$region0: #{tpu_custom_call.1}
  #allocation0 [shape = 'u32[]', space=smem, size = 0x4, offset = 0x4, fixed_abs, tag = 'smem constant byte address 0x4 - core index']
  #allocation1 [shape = 'u32[72,128]{1,0:T(1,128)}', space=vmem, size = 0x9000, scoped, tag = 'internal scratch']
  %s0 = inlined_call_operand.vmem [shape: f32[2,147,128], index: 0, kind: input, shape index: {}]
  %s1 = inlined_call_operand.vmem [shape: f32[64,147], index: 1, kind: input, shape index: {}]
  %s2 = inlined_call_operand.vmem [shape: f32[64,1], index: 2, kind: input, shape index: {}]
  %s3 = inlined_call_operand.hbm [shape: f32[2,64,128], index: 3, kind: output, shape index: {}]
  %s4 = sld [smem:[#allocation0]]
  $region45: #{tpu_custom_call.1} parent=0
    _
  %s6 = ssub.s32 1, %s4
  %s7 = scalar_select 0, %s6, %s4
  $region1: #{tpu_custom_call.1} parent=0
    #allocation2 [shape = 'u8[65536]{0}', space=vmem, size = 0x10000, scoped, tag = 'output window, operand 0']
    #allocation3 [shape = 's32[2]{0}', space=sflag, size = 0x8, scoped, tag = 'scoped memory for tpu_custom_call.1']
    %8 = vsyncpa [#allocation3], 0
    %s9 = scalar_lea.sflag [#allocation3], 1
    %10 = vsyncpa %s9, 0
    loop: start=0, step=1, limit=4
    $region2: #{tpu_custom_call.1} parent=1 // loop_pre_header
      _
    $region3: #{tpu_custom_call.1} parent=1 // loop_header
      %s12 = sphi 0, %s16
      %p13 = scmp.ge.s32.totalorder %s12, 4
      %s19 = sphi 0, %s31
      %s20 = sphi 0, %s27
      %s21 = sphi 0, %s19
      %s22 = sphi 0, %s20
      %s23 = sphi 0, %s21
      %s24 = sphi 0, %s22
      %s36 = sphi 0, %s38
      %s39 = sphi 0, %s36
      %s40 = sphi 0, %s39
      %s56 = sphi 0, %s40
      %s60 = sphi 0, %s60
      %s62 = sphi 0, %s60
      %s63 = sphi 0, %s62
      %s77 = sphi 0, %s63
      %s81 = sphi 0, %s81
      %s83 = sphi 0, %s81
      %s84 = sphi 0, %s83
      %s98 = sphi 0, %s84
      %s106 = sphi 0, %s108
      %s109 = sphi 0, %s106
      %s110 = sphi 0, %s109
      %s126 = sphi 0, %s110
    $region4: #{tpu_custom_call.1} parent=1 // loop_header_branch
      %15 = sbr.rel (%p13) target = $region8
    $region5: #{tpu_custom_call.1} parent=1 // loop_body
      %s17 = ssub.s32 %s12, 1
      %s18 = ssub.s32 %s12, 2
      %s25 = sadd.s32 1, %s20
      %p26 = scmp.ge.s32.totalorder %s25, 1
      %s27 = scalar_select %p26, 0, %s25
      %s28 = sadd.s32 1, %s19
      %s29 = scalar_select %p26, %s28, %s19
      %p30 = scmp.ge.s32.totalorder %s29, 2
      %s31 = scalar_select %p30, 0, %s29
      %s32 = ssub.s32 %s19, %s31
      %s33 = ssub.s32 %s20, %s27
      %s34 = sor.u32 %s32, %s33
      %p35 = scmp.eq.s32.totalorder %s34, 0
      %s37 = sadd.s32 %s36, 1
      %s38 = scalar_select %p35, %s36, %s37
      %p41 = pneg %p35
      %p42 = scmp.eq.s32.totalorder %s12, 1
      %p43 = por %p41, %p42
      %p44 = scmp.ne.s32.totalorder %s36, %s39
      %p45 = scmp.eq.s32.totalorder %s12, 0
      %p46 = por %p44, %p45
      %p47 = scmp.ne.s32.totalorder %s36, %s39
      %p48 = scmp.eq.s32.totalorder %s17, 1
      %p49 = por %p47, %p48
      %p50 = scmp.ne.s32.totalorder %s39, %s40
      %p51 = scmp.eq.s32.totalorder %s17, 0
      %p52 = por %p50, %p51
      %p53 = scmp.ne.s32.totalorder %s39, %s40
      %p54 = scmp.eq.s32.totalorder %s18, 1
      %p55 = por %p53, %p54
      %p57 = scmp.ne.s32.totalorder %s40, %s56
      %p58 = scmp.eq.s32.totalorder %s18, 0
      %p59 = por %p57, %p58
      %s61 = sadd.s32 %s60, 1
      %p64 = scmp.eq.s32.totalorder %s12, 1
      %p65 = scmp.ne.s32.totalorder %s60, %s62
      %p66 = scmp.eq.s32.totalorder %s12, 0
      %p67 = por %p65, %p66
      %p68 = scmp.ne.s32.totalorder %s60, %s62
      %p69 = scmp.eq.s32.totalorder %s17, 1
      %p70 = por %p68, %p69
      %p71 = scmp.ne.s32.totalorder %s62, %s63
      %p72 = scmp.eq.s32.totalorder %s17, 0
      %p73 = por %p71, %p72
      %p74 = scmp.ne.s32.totalorder %s62, %s63
      %p75 = scmp.eq.s32.totalorder %s18, 1
      %p76 = por %p74, %p75
      %p78 = scmp.ne.s32.totalorder %s63, %s77
      %p79 = scmp.eq.s32.totalorder %s18, 0
      %p80 = por %p78, %p79
      %s82 = sadd.s32 %s81, 1
      %p85 = scmp.eq.s32.totalorder %s12, 1
      %p86 = scmp.ne.s32.totalorder %s81, %s83
      %p87 = scmp.eq.s32.totalorder %s12, 0
      %p88 = por %p86, %p87
      %p89 = scmp.ne.s32.totalorder %s81, %s83
      %p90 = scmp.eq.s32.totalorder %s17, 1
      %p91 = por %p89, %p90
      %p92 = scmp.ne.s32.totalorder %s83, %s84
      %p93 = scmp.eq.s32.totalorder %s17, 0
      %p94 = por %p92, %p93
      %p95 = scmp.ne.s32.totalorder %s83, %s84
      %p96 = scmp.eq.s32.totalorder %s18, 1
      %p97 = por %p95, %p96
      %p99 = scmp.ne.s32.totalorder %s84, %s98
      %p100 = scmp.eq.s32.totalorder %s18, 0
      %p101 = por %p99, %p100
      %s102 = ssub.s32 %s19, %s31
      %s103 = ssub.s32 %s20, %s27
      %s104 = sor.u32 %s102, %s103
      %p105 = scmp.eq.s32.totalorder %s104, 0
      %s107 = sadd.s32 %s106, 1
      %s108 = scalar_select %p105, %s106, %s107
      %p111 = pneg %p105
      %p112 = scmp.eq.s32.totalorder %s12, 1
      %p113 = por %p111, %p112
      %p114 = scmp.ne.s32.totalorder %s106, %s109
      %p115 = scmp.eq.s32.totalorder %s12, 0
      %p116 = por %p114, %p115
      %p117 = scmp.ne.s32.totalorder %s106, %s109
      %p118 = scmp.eq.s32.totalorder %s17, 1
      %p119 = por %p117, %p118
      %p120 = scmp.ne.s32.totalorder %s109, %s110
      %p121 = scmp.eq.s32.totalorder %s17, 0
      %p122 = por %p120, %p121
      %p123 = scmp.ne.s32.totalorder %s109, %s110
      %p124 = scmp.eq.s32.totalorder %s18, 1
      %p125 = por %p123, %p124
      %p127 = scmp.ne.s32.totalorder %s110, %s126
      %p128 = scmp.eq.s32.totalorder %s18, 0
      %p129 = por %p127, %p128
      %p130 = scmp.le.s32.totalorder 1, %s12
      %p131 = scmp.lt.s32.totalorder %s12, 3
      %p132 = pnand %p130, %p131
      %p133 = pneg %p132
      // Predicated region
      $region9: #{tpu_custom_call.1} parent=5 // pred_check
        _
      $region10: #{tpu_custom_call.1} parent=5 // pred_check_branch
        %135 = sbr.rel (%p132) target = $region12
      $region11: #{tpu_custom_call.1} parent=5 // pred_region
        %s136 = ssub.s32 %s12, 1
        // Predicated region
        $region13: #{tpu_custom_call.1} parent=11 // pred_check
          %p137 = pneg %p73
        $region14: #{tpu_custom_call.1} parent=11 // pred_check_branch
          %139 = sbr.rel (%p137) target = $region16
        $region15: #{tpu_custom_call.1} parent=11 // pred_region
          _
        $region16: #{tpu_custom_call.1} parent=11 // pred_fallthru
          _
        // Predicated region
        $region17: #{tpu_custom_call.1} parent=11 // pred_check
          %p140 = pneg %p94
        $region18: #{tpu_custom_call.1} parent=11 // pred_check_branch
          %142 = sbr.rel (%p140) target = $region20
        $region19: #{tpu_custom_call.1} parent=11 // pred_region
          _
        $region20: #{tpu_custom_call.1} parent=11 // pred_fallthru
          _
      $region12: #{tpu_custom_call.1} parent=5 // pred_fallthru
        _
      %p143 = scmp.lt.s32.totalorder %s12, 2
      // Predicated region
      $region21: #{tpu_custom_call.1} parent=5 // pred_check
        %p144 = pneg %p143
      $region22: #{tpu_custom_call.1} parent=5 // pred_check_branch
        %146 = sbr.rel (%p144) target = $region24
      $region23: #{tpu_custom_call.1} parent=5 // pred_region
        // Predicated region
        $region25: #{tpu_custom_call.1} parent=23 // pred_check
          %p147 = pneg %p46
        $region26: #{tpu_custom_call.1} parent=23 // pred_check_branch
          %149 = sbr.rel (%p147) target = $region28
        $region27: #{tpu_custom_call.1} parent=23 // pred_region
          %p150 = scmp.lt.s32.totalorder %s19, 1
          %s151 = scalar_select %p150, %s19, 1
          %p152 = scmp.lt.s32.totalorder %s20, 0
          %s153 = scalar_select %p152, %s20, 0
          %s154 = smul.addr %s151, 19
          %s155 = sadd.s32 %s153, %s154
          %s156 = smul.addr %s155, 8
          %s157 = scalar_lea.vmem %s0, %s156
        $region28: #{tpu_custom_call.1} parent=23 // pred_fallthru
          _
      $region24: #{tpu_custom_call.1} parent=5 // pred_fallthru
        _
      %p158 = scmp.le.s32.totalorder 1, %s12
      %p159 = scmp.lt.s32.totalorder %s12, 3
      %p160 = pnand %p158, %p159
      %p161 = pneg %p160
      // Predicated region
      $region29: #{tpu_custom_call.1} parent=5 // pred_check
        _
      $region30: #{tpu_custom_call.1} parent=5 // pred_check_branch
        %163 = sbr.rel (%p160) target = $region32
      $region31: #{tpu_custom_call.1} parent=5 // pred_region
        %s164 = ssub.s32 %s12, 1
        %p165 = scmp.lt.s32.totalorder %s21, 1
        %s166 = scalar_select %p165, %s21, 1
        %p167 = scmp.lt.s32.totalorder %s22, 0
        %s168 = scalar_select %p167, %s22, 0
        %s169 = smul.addr %s166, 19
        %s170 = sadd.s32 %s168, %s169
        %s171 = smul.addr %s170, 8
        %s172 = scalar_lea.vmem %s0, %s171
        %p173 = pneg %p52
        %p174 = pneg %p49
        %p175 = pneg %p73
        %p176 = pneg %p70
        %p177 = pneg %p94
        %p178 = pneg %p91
        %p179 = pneg %p122
        %p180 = pneg %p119
        %s181 = sand.u32 %s109, 1
        %s182 = scalar_lea.sflag [#allocation3], %s181
        %s183 = sand.u32 %s109, 1
        %s184 = smul.addr %s183, 64
        %s185 = scalar_lea.vmem [#allocation2], %s184
        %p186 = scmp.lt.s32.totalorder %s21, 1
        %s187 = scalar_select %p186, %s21, 1
        %p188 = scmp.lt.s32.totalorder %s22, 0
        %s189 = scalar_select %p188, %s22, 0
        %s190 = smul.addr %s187, 19
        %s191 = sadd.s32 %s189, %s190
        %s192 = smul.addr %s191, 8
        %s193 = scalar_lea.vmem %s0, %s192
        %v194 = vld [vmem:[%s1] sm:$0xff]
        %v195 = vld [vmem:[%s1 + $0x8] sm:$0xff]
        %v196 = vld [vmem:[%s1 + $0x10] sm:$0xff]
        %v197 = vld [vmem:[%s1 + $0x18] sm:$0xff]
        %v198 = vld [vmem:[%s1 + $0x20] sm:$0xff]
        %v199 = vld [vmem:[%s1 + $0x28] sm:$0xff]
        %v200 = vld [vmem:[%s1 + $0x30] sm:$0xff]
        %v201 = vld [vmem:[%s1 + $0x38] sm:$0xff]
        %v202 = vld [vmem:[%s1 + $0x40] sm:$0xff]
        %v203 = vld [vmem:[%s1 + $0x48] sm:$0xff]
        %v204 = vld [vmem:[%s1 + $0x50] sm:$0xff]
        %v205 = vld [vmem:[%s1 + $0x58] sm:$0xff]
        %v206 = vld [vmem:[%s1 + $0x60] sm:$0xff]
        %v207 = vld [vmem:[%s1 + $0x68] sm:$0xff]
        %v208 = vld [vmem:[%s1 + $0x70] sm:$0xff]
        %v209 = vld [vmem:[%s1 + $0x78] sm:$0xff]
        %v210 = vld [vmem:[%s193] sm:$0xff]
        %v211 = vld [vmem:[%s193 + $0x8] sm:$0xff]
        %v212 = vld [vmem:[%s193 + $0x10] sm:$0xff]
        %v213 = vld [vmem:[%s193 + $0x18] sm:$0xff]
        %v214 = vld [vmem:[%s193 + $0x20] sm:$0xff]
        %v215 = vld [vmem:[%s193 + $0x28] sm:$0xff]
        %v216 = vld [vmem:[%s193 + $0x30] sm:$0xff]
        %v217 = vld [vmem:[%s193 + $0x38] sm:$0xff]
        %v218 = vld [vmem:[%s193 + $0x40] sm:$0xff]
        %v219 = vld [vmem:[%s193 + $0x48] sm:$0xff]
        %v220 = vld [vmem:[%s193 + $0x50] sm:$0xff]
        %v221 = vld [vmem:[%s193 + $0x58] sm:$0xff]
        %v222 = vld [vmem:[%s193 + $0x60] sm:$0xff]
        %v223 = vld [vmem:[%s193 + $0x68] sm:$0xff]
        %v224 = vld [vmem:[%s193 + $0x70] sm:$0xff]
        %v225 = vld [vmem:[%s193 + $0x78] sm:$0xff]
        %v226 = vld [vmem:[%s193 + $0x80] sm:$0xff]
        %v227 = vld [vmem:[%s193 + $0x88] sm:$0xff]
        %v228 = vld [vmem:[%s193 + $0x90] sm:$0x7]
        %v229 = vld [vmem:[%s2] sm:$0xff]
        %v230 = vld [vmem:[%s2 + $0x8] sm:$0xff]
        %v231 = vld [vmem:[%s2 + $0x10] sm:$0xff]
        %v232 = vld [vmem:[%s2 + $0x18] sm:$0xff]
        %v233 = vld [vmem:[%s2 + $0x20] sm:$0xff]
        %v234 = vld [vmem:[%s2 + $0x28] sm:$0xff]
        %v235 = vld [vmem:[%s2 + $0x30] sm:$0xff]
        %v236 = vld [vmem:[%s2 + $0x38] sm:$0xff]
        %238 = vset.pattern.permute.xlu0 0
        %239 = vperm.xlu0 %238, %v229
        %v240 = vpop.permute.xlu0 %239
        %243 = vset.pattern.permute.xlu0 0
        %244 = vperm.xlu0 %243, %v230
        %v245 = vpop.permute.xlu0 %244
        %248 = vset.pattern.permute.xlu0 0
        %249 = vperm.xlu0 %248, %v231
        %v250 = vpop.permute.xlu0 %249
        %253 = vset.pattern.permute.xlu0 0
        %254 = vperm.xlu0 %253, %v232
        %v255 = vpop.permute.xlu0 %254
        %258 = vset.pattern.permute.xlu0 0
        %259 = vperm.xlu0 %258, %v233
        %v260 = vpop.permute.xlu0 %259
        %263 = vset.pattern.permute.xlu0 0
        %264 = vperm.xlu0 %263, %v234
        %v265 = vpop.permute.xlu0 %264
        %268 = vset.pattern.permute.xlu0 0
        %269 = vperm.xlu0 %268, %v235
        %v270 = vpop.permute.xlu0 %269
        %273 = vset.pattern.permute.xlu0 0
        %274 = vperm.xlu0 %273, %v236
        %v275 = vpop.permute.xlu0 %274
        %vm277 = vcmask 154624
        %v279 = vsel %vm277, %v195, 0
        %v282 = vsel %vm277, %v197, 0
        %v285 = vsel %vm277, %v199, 0
        %v288 = vsel %vm277, %v201, 0
        %v291 = vsel %vm277, %v203, 0
        %v294 = vsel %vm277, %v205, 0
        %v297 = vsel %vm277, %v207, 0
        %v300 = vsel %vm277, %v209, 0
        %vm302 = vcmask 1042432
        %v304 = vsel %vm302, %v228, 0
        %306 = vmatpush.msra.mxu0 %v225
        %307 = vmatpush.msra.mxu0 %v224
        %308 = vmatpush.msra.mxu0 %v223
        %309 = vmatpush.msra.mxu0 %v222
        %310 = vmatpush.msra.mxu0 %v221
        %311 = vmatpush.msra.mxu0 %v220
        %312 = vmatpush.msra.mxu0 %v219
        %313 = vmatpush.msra.mxu0 %v218
        %314 = vmatpush.msra.mxu0 %v217
        %315 = vmatpush.msra.mxu0 %v216
        %316 = vmatpush.msra.mxu0 %v215
        %317 = vmatpush.msra.mxu0 %v214
        %318 = vmatpush.msra.mxu0 %v213
        %319 = vmatpush.msra.mxu0 %v212
        %320 = vmatpush.msra.mxu0 %v211
        %321 = vmatpush.msra.mxu0 %v210
        %322 = vmatmul.f32.gmra.mxu0 %v194
        %v323 = vpop.f32.mrf.mxu0
        %v324 = vadd.f32 %v240, %v323
        %325 = vmatmul.f32.gmra.mxu0 %v196
        %v326 = vpop.f32.mrf.mxu0
        %v327 = vadd.f32 %v245, %v326
        %328 = vmatmul.f32.gmra.mxu0 %v198
        %v329 = vpop.f32.mrf.mxu0
        %v330 = vadd.f32 %v250, %v329
        %331 = vmatmul.f32.gmra.mxu0 %v200
        %v332 = vpop.f32.mrf.mxu0
        %v333 = vadd.f32 %v255, %v332
        %334 = vmatmul.f32.gmra.mxu0 %v202
        %v335 = vpop.f32.mrf.mxu0
        %v336 = vadd.f32 %v260, %v335
        %337 = vmatmul.f32.gmra.mxu0 %v204
        %v338 = vpop.f32.mrf.mxu0
        %v339 = vadd.f32 %v265, %v338
        %340 = vmatmul.f32.gmra.mxu0 %v206
        %v341 = vpop.f32.mrf.mxu0
        %v342 = vadd.f32 %v270, %v341
        %343 = vmatmul.f32.gmra.mxu0 %v208
        %v344 = vpop.f32.mrf.mxu0
        %v345 = vadd.f32 %v275, %v344
        %346 = vdwg.mxu0
        %347 = vmatpush.msra.mxu0 0.0
        %348 = vmatpush.msra.mxu0 0.0
        %349 = vmatpush.msra.mxu0 0.0
        %350 = vmatpush.msra.mxu0 0.0
        %351 = vmatpush.msra.mxu0 0.0
        %352 = vmatpush.msra.mxu0 0.0
        %353 = vmatpush.msra.mxu0 0.0
        %354 = vmatpush.msra.mxu0 0.0
        %355 = vmatpush.msra.mxu0 0.0
        %356 = vmatpush.msra.mxu0 0.0
        %357 = vmatpush.msra.mxu0 0.0
        %358 = vmatpush.msra.mxu0 0.0
        %359 = vmatpush.msra.mxu0 0.0
        %360 = vmatpush.msra.mxu0 %v304
        %361 = vmatpush.msra.mxu0 %v227
        %362 = vmatpush.msra.mxu0 %v226
        %363 = vmatmul.f32.gmra.mxu0 %v279
        %v364 = vpop.f32.mrf.mxu0
        %v365 = vadd.f32 %v324, %v364
        %366 = vmatmul.f32.gmra.mxu0 %v282
        %v367 = vpop.f32.mrf.mxu0
        %v368 = vadd.f32 %v327, %v367
        %369 = vmatmul.f32.gmra.mxu0 %v285
        %v370 = vpop.f32.mrf.mxu0
        %v371 = vadd.f32 %v330, %v370
        %372 = vmatmul.f32.gmra.mxu0 %v288
        %v373 = vpop.f32.mrf.mxu0
        %v374 = vadd.f32 %v333, %v373
        %375 = vmatmul.f32.gmra.mxu0 %v291
        %v376 = vpop.f32.mrf.mxu0
        %v377 = vadd.f32 %v336, %v376
        %378 = vmatmul.f32.gmra.mxu0 %v294
        %v379 = vpop.f32.mrf.mxu0
        %v380 = vadd.f32 %v339, %v379
        %381 = vmatmul.f32.gmra.mxu0 %v297
        %v382 = vpop.f32.mrf.mxu0
        %v383 = vadd.f32 %v342, %v382
        %384 = vmatmul.f32.gmra.mxu0 %v300
        %v385 = vpop.f32.mrf.mxu0
        %v386 = vadd.f32 %v345, %v385
        %387 = vdwg.mxu0
        %388 = vst [vmem:[%s185] sm:$0xff] %v365
        %389 = vst [vmem:[%s185 + $0x8] sm:$0xff] %v368
        %390 = vst [vmem:[%s185 + $0x10] sm:$0xff] %v371
        %391 = vst [vmem:[%s185 + $0x18] sm:$0xff] %v374
        %392 = vst [vmem:[%s185 + $0x20] sm:$0xff] %v377
        %393 = vst [vmem:[%s185 + $0x28] sm:$0xff] %v380
        %394 = vst [vmem:[%s185 + $0x30] sm:$0xff] %v383
        %395 = vst [vmem:[%s185 + $0x38] sm:$0xff] %v386
        %s396 = sand.u32 %s109, 1
        %s397 = scalar_lea.sflag [#allocation3], %s396
        %s398 = sand.u32 %s109, 1
        %s399 = smul.addr %s398, 64
        %s400 = scalar_lea.vmem [#allocation2], %s399
        // Predicated region
        $region33: #{tpu_custom_call.1} parent=31 // pred_check
          %p401 = pneg %p119
        $region34: #{tpu_custom_call.1} parent=31 // pred_check_branch
          %403 = sbr.rel (%p401) target = $region36
        $region35: #{tpu_custom_call.1} parent=31 // pred_region
          %405 = vsyncadd %s397, 0
          %s406 = smul.addr %s21, 8
          %s407 = sadd.s32 %s22, %s406
          %s408 = smul.addr %s407, 8
          %s409 = scalar_lea.hbm %s3, %s408
          %s410 = sshll.u32 %s400, 4
          %s411 = int_to_ptr.vmem [resolvable:$true] %s410
          %s412 = sshll.u32 %s409, 4
          %s413 = int_to_ptr.hbm [resolvable:$true] %s412
          %418 = dma.vmem_to_hbm [thread:$0]  %s411, 1024, %s413, %s397, 128, 128, 8
        $region36: #{tpu_custom_call.1} parent=31 // pred_fallthru
          _
      $region32: #{tpu_custom_call.1} parent=5 // pred_fallthru
        _
      %p419 = scmp.le.s32.totalorder 2, %s12
      // Predicated region
      $region37: #{tpu_custom_call.1} parent=5 // pred_check
        %p420 = pneg %p419
      $region38: #{tpu_custom_call.1} parent=5 // pred_check_branch
        %422 = sbr.rel (%p420) target = $region40
      $region39: #{tpu_custom_call.1} parent=5 // pred_region
        %s423 = ssub.s32 %s12, 2
        // Predicated region
        $region41: #{tpu_custom_call.1} parent=39 // pred_check
          %p424 = pneg %p125
        $region42: #{tpu_custom_call.1} parent=39 // pred_check_branch
          %426 = sbr.rel (%p424) target = $region44
        $region43: #{tpu_custom_call.1} parent=39 // pred_region
          %s427 = sand.u32 %s110, 1
          %s428 = scalar_lea.sflag [#allocation3], %s427
          %s429 = sand.u32 %s110, 1
          %s430 = smul.addr %s429, 64
          %s431 = scalar_lea.vmem [#allocation2], %s430
          %433 = dma.done %s428, 1024
        $region44: #{tpu_custom_call.1} parent=39 // pred_fallthru
          _
      $region40: #{tpu_custom_call.1} parent=5 // pred_fallthru
        _
    $region6: #{tpu_custom_call.1} parent=1 // loop_footer
      %s16 = sadd.s32 1, %s12
    $region7: #{tpu_custom_call.1} parent=1 // loop_footer_branch
      %11 = sbr.rel target = $region3
    $region8: #{tpu_custom_call.1} parent=1 // loop_exit
      _
    %434 = vsyncpa [#allocation3], 1
    %s435 = scalar_lea.sflag [#allocation3], 1
    %436 = vsyncpa %s435, 1

</llo_original>
